<compile_context>
chip_gen: v5e
topology: v5e:2x2
jax: 0.10.0
libtpu: 0.0.40
codegen_flags: <defaults>
</compile_context>

<pallas_src>
import functools

import jax
import jax.numpy as jnp
from jax import lax
from jax.experimental import pallas as pl
from jax.experimental.pallas import tpu as pltpu


# dot_general dimension numbers contracting the LAST dim of both operands (A @ B^T),
# the MXU-native "NT" form -- avoids materializing any transpose.
_LAST_LAST = (((1,), (1,)), ((), ()))


def _vq_kernel(x_ref, e_hi_ref, e_lo_ref, e2h_ref, dig_ref, q_ref, idx_ref,
               *cnt_refs, m_valid, tile_m, emit_counts):
    # x_ref:    (TM, D)    input tile, native dtype (cast to bf16 here)
    # e_hi_ref: (C, D)     bf16 codebook (distance operand + gather "hi" plane)
    # e_lo_ref: (C, D)     bf16 residual plane: bf16(E_f32 - f32(hi))
    # e2h_ref:  (1, C)     f32  0.5 * ||e_c||^2 (precomputed)
    # dig_ref:  (8, C)     bf16 [ (c//256)*256 ; c%256 ; 0... ]  (all bf16-exact)
    # q_ref:    (TM, D)    quantized output tile
    # idx_ref:  (1, 1, TM) int32 code indices (lane-dense)
    # cnt_refs: ((1,1,C),) f32 per-tile code-usage counts (only if emit_counts)
    x = x_ref[...].astype(jnp.bfloat16)              # (TM, D) in-kernel cast
    e_hi = e_hi_ref[...]                             # (C, D)  bf16

    # argmax_c of -(||x||^2 - 2 x.e_c + ||e_c||^2) == argmax_c of (x.e_c - 0.5 ||e_c||^2)
    xe = lax.dot_general(x, e_hi, _LAST_LAST,
                         preferred_element_type=jnp.float32)      # (TM, C) MXU bf16
    dist = xe - e2h_ref[...]                                      # (TM, C) f32

    C = dist.shape[-1]
    code_iota = lax.broadcasted_iota(jnp.int32, dist.shape, 1)    # (TM, C)
    dmax = jnp.max(dist, axis=-1, keepdims=True)                  # (TM, 1)
    # First-occurrence tie-break (torch.argmax behavior).  Sentinel C-1 keeps the
    # index in range even for a degenerate all-NaN row.
    ind = jnp.min(jnp.where(dist == dmax, code_iota, C - 1),
                  axis=-1, keepdims=True)                         # (TM, 1)
    # Padded rows (only possible in the last, partial tile of the cdiv grid):
    # push their index out of range so their one-hot row is all-zero -> they
    # contribute nothing to the counts.  Cheap (TM, 1) select, not a (TM, C) where.
    if m_valid % tile_m != 0:
        row = lax.broadcasted_iota(jnp.int32, (tile_m, 1), 0)
        ind = jnp.where(pl.program_id(0) * tile_m + row < m_valid, ind, C)
    hit = code_iota == ind                                        # (TM, C) bool one-hot
    onehot = hit.astype(jnp.bfloat16)                             # single materialization

    # quantize = one_hot @ (E_hi + E_lo): two bf16 MXU passes, f32 accumulation.
    # Exactly one nonzero (0/1) term per output => rows equal hi+lo of the selected
    # codebook row (~2^-17 relative of the f32 codebook).
    q = jnp.dot(onehot, e_hi, preferred_element_type=jnp.float32)
    q = q + jnp.dot(onehot, e_lo_ref[...], preferred_element_type=jnp.float32)
    q_ref[...] = q.astype(q_ref.dtype)

    # Lane-dense indices with no sublane->lane relayout: one tiny bf16 MXU matmul.
    # dig[r, m] = digits[r, ind[m]] exactly (single 0/1 term, bf16-exact digit
    # values, f32 accumulation); sum over the 8 digit rows == ind[m].
    dig = lax.dot_general(dig_ref[...], onehot, _LAST_LAST,
                          preferred_element_type=jnp.float32)     # (8, TM)
    idx_row = jnp.sum(dig, axis=0, keepdims=True)                 # (1, TM) exact ints
    idx_ref[...] = idx_row.astype(jnp.int32).reshape(1, 1, tile_m)

    if emit_counts:
        (cnt_ref,) = cnt_refs
        # Padded rows are already all-zero in `onehot`, so a plain column sum is exact.
        cnt = jnp.sum(onehot.astype(jnp.float32), axis=0, keepdims=True)   # (1, C)
        cnt_ref[...] = cnt.reshape(1, 1, C)


def _round_up(a, b):
    return ((a + b - 1) // b) * b


def _vmem_capacity_bytes():
    """Per-core VMEM capacity; conservative 64 MiB fallback (v7x-sized)."""
    try:
        return int(pltpu.get_tpu_info().vmem_capacity_bytes)
    except Exception:
        return 64 * 1024 * 1024


def _pick_tile_m(M, D, C, x_bytes, out_bytes, budget):
    """Largest row tile (multiple of 128, preferring >=256 for the 256x256 MXU of
    v6e/v7x) whose working set fits the generation-derived VMEM budget."""
    # Grid-invariant operands are single-buffered (pl.Buffered(1)):
    # bf16 hi + bf16 lo codebook planes + 0.5||e||^2 + digit rows.
    resident = 2 * C * D * 2 + C * 4 + 8 * C * 2
    best = 128
    for tm in (1024, 512, 256, 128):
        per_tile = 2 * (tm * D * (x_bytes + out_bytes) + tm * 4 + C * 4)  # dbl-buffered I/O
        live = tm * D * 6 + 4 * tm * C * 4   # bf16 x + f32 q + dist/one-hot live values
        if resident + per_tile + live <= budget:
            best = tm
            break
    # Don't tile far past the actual number of rows.
    return min(best, max(128, _round_up(max(M, 1), 128)))


def _vq_pallas(flat_x, e_hi, e_lo, e2h, digits, *, out_dtype, tile_m, m_valid,
               emit_counts, vmem_limit):
    M, D = flat_x.shape
    C = e_hi.shape[0]
    num_tiles = pl.cdiv(M, tile_m)
    x_bytes = jnp.dtype(flat_x.dtype).itemsize
    out_bytes = jnp.dtype(out_dtype).itemsize

    kernel = functools.partial(_vq_kernel, m_valid=m_valid, tile_m=tile_m,
                               emit_counts=emit_counts)

    flops = 2 * M * C * D            # bf16 distance matmul
    flops += 2 * 2 * M * C * D       # hi/lo gather matmuls
    flops += 2 * M * C * 8           # lane-dense index digit matmul
    bytes_accessed = (M * D * x_bytes + 2 * C * D * 2 + C * 4 + 8 * C * 2
                      + M * D * out_bytes + num_tiles * tile_m * 4
                      + (num_tiles * C * 4 if emit_counts else 0))

    # Grid-invariant operands: block index never changes -> single-buffered.
    invariant = dict(pipeline_mode=pl.Buffered(1))
    in_specs = [
        pl.BlockSpec((tile_m, D), lambda i: (i, 0)),               # x tile (native dtype)
        pl.BlockSpec((C, D), lambda i: (0, 0), **invariant),       # codebook hi plane (bf16)
        pl.BlockSpec((C, D), lambda i: (0, 0), **invariant),       # codebook lo plane (bf16)
        pl.BlockSpec((1, C), lambda i: (0, 0), **invariant),       # 0.5 * ||e||^2
        pl.BlockSpec((8, C), lambda i: (0, 0), **invariant),       # index digit rows
    ]
    out_shape = [
        jax.ShapeDtypeStruct((M, D), out_dtype),
        jax.ShapeDtypeStruct((num_tiles, 1, tile_m), jnp.int32),
    ]
    out_specs = [
        pl.BlockSpec((tile_m, D), lambda i: (i, 0)),               # quantize
        pl.BlockSpec((1, 1, tile_m), lambda i: (i, 0, 0)),         # lane-dense indices
    ]
    if emit_counts:
        out_shape.append(jax.ShapeDtypeStruct((num_tiles, 1, C), jnp.float32))
        out_specs.append(pl.BlockSpec((1, 1, C), lambda i: (i, 0, 0)))

    grid_spec = pltpu.PrefetchScalarGridSpec(
        num_scalar_prefetch=0,
        grid=(num_tiles,),
        in_specs=in_specs,
        out_specs=out_specs,
    )

    return pl.pallas_call(
        kernel,
        out_shape=tuple(out_shape),
        grid_spec=grid_spec,
        compiler_params=pltpu.CompilerParams(
            # No cross-step accumulator -> the row-tile axis can be sharded across
            # TensorCores (v7x megacore); neutral on single-TC v5e/v6e.
            dimension_semantics=("parallel",),
            vmem_limit_bytes=int(vmem_limit),
        ),
        cost_estimate=pl.CostEstimate(
            flops=flops, transcendentals=0, bytes_accessed=bytes_accessed),
    )(flat_x, e_hi, e_lo, e2h, digits)


def vector_quantize_forward(x, embed, *, tile_m=None, quantize_dtype=None):
    """Eval-mode forward of VectorQuantize (heads=1, no projection, svq_temp=None).

    x:     (B, N, D) float
    embed: (C, D)    codebook
    Returns (quantize, embed_ind, vq_loss, perplexity) mirroring the PyTorch module.
    """
    if x.ndim != 3:
        raise ValueError(f"x must be (B, N, D); got shape {x.shape}")
    B, N, D = x.shape
    C, Dc = embed.shape
    if Dc != D:
        raise ValueError(f"codebook dim {Dc} != input dim {D}")
    assert C <= 256 * 256, "lane-dense index digits assume codebook_size <= 65536"
    M = B * N

    out_dtype = embed.dtype if quantize_dtype is None else quantize_dtype
    x_bytes = jnp.dtype(x.dtype).itemsize
    out_bytes = jnp.dtype(out_dtype).itemsize

    # Generation-derived VMEM budgets (~70% for the tile sweep, ~80% hard limit).
    cap = _vmem_capacity_bytes()
    budget = (7 * cap) // 10
    vmem_limit = (4 * cap) // 5

    if tile_m is None:
        tile_m = _pick_tile_m(M, D, C, x_bytes, out_bytes, budget)
    num_tiles = pl.cdiv(M, tile_m)

    # Emit per-tile counts from the kernel only when their HBM traffic is small
    # relative to the x read; otherwise compute counts outside from embed_ind.
    emit_counts = num_tiles * C * 4 <= max(1 << 20, (M * D * x_bytes) // 4)

    # x stays in its native dtype and is NOT padded; the kernel casts per tile and
    # Pallas handles the partial last block of the cdiv grid.
    flat = x.reshape(M, D)

    # hi/lo bf16 planes of the codebook: hi is also the distance-matmul operand.
    e_f32 = embed.astype(jnp.float32)
    e_hi = e_f32.astype(jnp.bfloat16)
    e_lo = (e_f32 - e_hi.astype(jnp.float32)).astype(jnp.bfloat16)
    e2h = 0.5 * jnp.sum(e_f32 * e_f32, axis=-1)[None, :]          # (1, C)

    # Digit rows for the lane-dense index matmul: (c//256)*256 and c%256 are both
    # exactly representable in bf16; row0 + row1 == c.  Rows 2..7 are zero padding.
    codes = jnp.arange(C, dtype=jnp.int32)
    digits = jnp.zeros((8, C), dtype=jnp.float32)
    digits = digits.at[0].set(((codes // 256) * 256).astype(jnp.float32))
    digits = digits.at[1].set((codes % 256).astype(jnp.float32))
    digits = digits.astype(jnp.bfloat16)

    outs = _vq_pallas(flat, e_hi, e_lo, e2h, digits, out_dtype=out_dtype,
                      tile_m=tile_m, m_valid=M, emit_counts=emit_counts,
                      vmem_limit=vmem_limit)
    if emit_counts:
        q, idx, cnt = outs
    else:
        q, idx = outs

    quantize = q.reshape(B, N, D)
    embed_ind = idx.reshape(-1)[:M].reshape(B, N)

    if emit_counts:
        counts = jnp.sum(cnt.reshape(-1, C), axis=0)              # (C,) exact
    else:
        # Large num_tiles*C: cheaper to bincount the indices than to stream
        # per-tile count partials through HBM.
        counts = jnp.zeros((C,), jnp.float32).at[embed_ind.reshape(-1)].add(1.0)

    avg_probs = counts / jnp.float32(M)
    perplexity = jnp.exp(-jnp.sum(avg_probs * jnp.log(avg_probs + 1e-10)))

    # eval-mode losses (requires_grad=False path of the reference)
    vq_loss = {
        "loss": jnp.zeros((1,), dtype=jnp.float32),
        "commit_loss": jnp.zeros((), dtype=jnp.float32),
        "orthogonal_reg_loss": jnp.zeros((), dtype=jnp.float32),
    }
    # TODO(synk): training-mode EMA codebook update, kmeans init, dead-code expiry,
    # emb_dropout and commitment/orthogonal losses are stateful training-only paths
    # and are not part of this inference kernel.
    return quantize, embed_ind, vq_loss, perplexity


if __name__ == "__main__":
    # Small deterministic setup consistent with the module:
    # dim=32, codebook_size=64, x of shape (B=2, N=8, D=32).
    B, N, D, C = 2, 8, 32, 64

    key = jax.random.PRNGKey(0)
    k_embed, k_x = jax.random.split(key)
    embed = jax.random.normal(k_embed, (C, D), dtype=jnp.float32)  # torch.randn(codebook_size, dim)
    x = jax.random.normal(k_x, (B, N, D), dtype=jnp.float32)

    fwd = jax.jit(vector_quantize_forward)
    quantize, embed_ind, vq_loss, perplexity = fwd(x, embed)
    jax.block_until_ready((quantize, embed_ind, vq_loss["loss"], perplexity))

    # light sanity checks (shapes / internal consistency), not benchmarks
    assert quantize.shape == (B, N, D)
    assert embed_ind.shape == (B, N)
    assert embed_ind.dtype == jnp.int32
    assert perplexity.shape == ()
    assert bool(jnp.isfinite(perplexity)) and bool(perplexity > 0)
    assert bool(jnp.all((embed_ind >= 0) & (embed_ind < C)))

    # quantize rows must closely match the selected codebook rows (hi/lo planes)
    gathered = embed[embed_ind.reshape(-1)].reshape(B, N, D)
    assert bool(jnp.allclose(quantize, gathered, rtol=1e-4, atol=1e-4))

    # the chosen codeword must be (near-)optimal in true f32 Euclidean distance
    x_flat = x.reshape(-1, D)
    d_kernel = jnp.sum((x_flat - embed[embed_ind.reshape(-1)]) ** 2, axis=-1)
    d_opt = jnp.min(jnp.sum((x_flat[:, None, :] - embed[None, :, :]) ** 2, axis=-1), axis=-1)
    assert bool(jnp.all(d_kernel <= d_opt + 0.5))

    print("KERNEL_OK")
</pallas_src>

<mosaic_0001>
module attributes {stable_mosaic.version = 11 : i64} {
  func.func @_vq_kernel(%arg0: i32, %arg1: memref<128x32xf32, #tpu.memory_space<vmem>>, %arg2: memref<64x32xbf16, #tpu.memory_space<vmem>>, %arg3: memref<64x32xbf16, #tpu.memory_space<vmem>>, %arg4: memref<1x64xf32, #tpu.memory_space<vmem>>, %arg5: memref<8x64xbf16, #tpu.memory_space<vmem>>, %arg6: memref<128x32xf32, #tpu.memory_space<vmem>>, %arg7: memref<1x1x128xi32, #tpu.memory_space<vmem>>, %arg8: memref<1x1x64xf32, #tpu.memory_space<vmem>>) attributes {dimension_semantics = [#tpu.dimension_semantics<parallel>], iteration_bounds = array<i64: 1>, scalar_prefetch = 0 : i64, scratch_operands = 0 : i64, tpu.core_type = #tpu.core_type<tc>, window_params = [{transform_indices = @transform_0, window_bounds = array<i64: 128, 32>}, {pipeline_mode = #tpu.pipeline_mode<synchronous>, transform_indices = @transform_1, window_bounds = array<i64: 64, 32>}, {pipeline_mode = #tpu.pipeline_mode<synchronous>, transform_indices = @transform_2, window_bounds = array<i64: 64, 32>}, {pipeline_mode = #tpu.pipeline_mode<synchronous>, transform_indices = @transform_3, window_bounds = array<i64: 1, 64>}, {pipeline_mode = #tpu.pipeline_mode<synchronous>, transform_indices = @transform_4, window_bounds = array<i64: 8, 64>}, {transform_indices = @transform_5, window_bounds = array<i64: 128, 32>}, {transform_indices = @transform_6, window_bounds = array<i64: 1, 1, 128>}, {transform_indices = @transform_7, window_bounds = array<i64: 1, 1, 64>}]} {
    %c0 = arith.constant 0 : index
    %c0_0 = arith.constant 0 : index
    %0 = vector.load %arg1[%c0, %c0_0] : memref<128x32xf32, #tpu.memory_space<vmem>>, vector<128x32xf32>
    %1 = arith.truncf %0 : vector<128x32xf32> to vector<128x32xbf16>
    %c0_1 = arith.constant 0 : index
    %c0_2 = arith.constant 0 : index
    %2 = vector.load %arg2[%c0_1, %c0_2] : memref<64x32xbf16, #tpu.memory_space<vmem>>, vector<64x32xbf16>
    %cst = arith.constant dense<0.000000e+00> : vector<128x64xf32>
    %3 = tpu.matmul %1, %2, %cst {dimension_numbers = #tpu.dot_dimension_numbers<[1], [1], [0], [0], [0, 0, 1, 0], [], []>} : vector<128x32xbf16>, vector<64x32xbf16>, vector<128x64xf32> -> vector<128x64xf32>
    %c0_3 = arith.constant 0 : index
    %c0_4 = arith.constant 0 : index
    %4 = vector.load %arg4[%c0_3, %c0_4] : memref<1x64xf32, #tpu.memory_space<vmem>>, vector<1x64xf32>
    %5 = vector.broadcast %4 : vector<1x64xf32> to vector<128x64xf32>
    %6 = arith.subf %3, %5 : vector<128x64xf32>
    %7 = tpu.iota {dimensions = array<i32: 1>} : vector<128x64xi32>
    %cst_5 = arith.constant dense<0xFF800000> : vector<128xf32>
    %8 = vector.multi_reduction <maximumf>, %6, %cst_5 [1] : vector<128x64xf32> to vector<128xf32>
    %9 = vector.shape_cast %8 : vector<128xf32> to vector<128x1xf32>
    %10 = vector.broadcast %9 : vector<128x1xf32> to vector<128x64xf32>
    %11 = arith.cmpf oeq, %6, %10 : vector<128x64xf32>
    %c63_i32 = arith.constant 63 : i32
    %12 = vector.broadcast %c63_i32 : i32 to vector<128x64xi32>
    %13 = arith.select %11, %7, %12 : vector<128x64xi1>, vector<128x64xi32>
    %cst_6 = arith.constant dense<2147483647> : vector<128xi32>
    %14 = vector.multi_reduction <minsi>, %13, %cst_6 [1] : vector<128x64xi32> to vector<128xi32>
    %15 = vector.shape_cast %14 : vector<128xi32> to vector<128x1xi32>
    %16 = tpu.iota {dimensions = array<i32: 0>} : vector<128x1xi32>
    %c128_i32 = arith.constant 128 : i32
    %17 = arith.muli %arg0, %c128_i32 : i32
    %18 = vector.broadcast %17 : i32 to vector<128x1xi32>
    %19 = arith.addi %18, %16 : vector<128x1xi32>
    %c16_i32 = arith.constant 16 : i32
    %20 = vector.broadcast %c16_i32 : i32 to vector<128x1xi32>
    %21 = arith.cmpi slt, %19, %20 : vector<128x1xi32>
    %c64_i32 = arith.constant 64 : i32
    %22 = vector.broadcast %c64_i32 : i32 to vector<128x1xi32>
    %23 = arith.select %21, %15, %22 : vector<128x1xi1>, vector<128x1xi32>
    %24 = vector.broadcast %23 : vector<128x1xi32> to vector<128x64xi32>
    %25 = arith.cmpi eq, %7, %24 : vector<128x64xi32>
    %26 = arith.extui %25 : vector<128x64xi1> to vector<128x64xi32>
    %27 = arith.sitofp %26 : vector<128x64xi32> to vector<128x64xf32>
    %28 = arith.truncf %27 : vector<128x64xf32> to vector<128x64xbf16>
    %cst_7 = arith.constant dense<0.000000e+00> : vector<128x32xf32>
    %29 = tpu.matmul %28, %2, %cst_7 {dimension_numbers = #tpu.dot_dimension_numbers<[1], [0], [0], [1], [0, 0, 1, 1], [], []>} : vector<128x64xbf16>, vector<64x32xbf16>, vector<128x32xf32> -> vector<128x32xf32>
    %c0_8 = arith.constant 0 : index
    %c0_9 = arith.constant 0 : index
    %30 = vector.load %arg3[%c0_8, %c0_9] : memref<64x32xbf16, #tpu.memory_space<vmem>>, vector<64x32xbf16>
    %cst_10 = arith.constant dense<0.000000e+00> : vector<128x32xf32>
    %31 = tpu.matmul %28, %30, %cst_10 {dimension_numbers = #tpu.dot_dimension_numbers<[1], [0], [0], [1], [0, 0, 1, 1], [], []>} : vector<128x64xbf16>, vector<64x32xbf16>, vector<128x32xf32> -> vector<128x32xf32>
    %32 = arith.addf %29, %31 : vector<128x32xf32>
    %c0_11 = arith.constant 0 : index
    %c0_12 = arith.constant 0 : index
    %33 = vector.load %arg6[%c0_11, %c0_12] : memref<128x32xf32, #tpu.memory_space<vmem>>, vector<128x32xf32>
    tpu.vector_store %arg6[%c0_11, %c0_12], %32 {strides = array<i32>} : memref<128x32xf32, #tpu.memory_space<vmem>>, vector<128x32xf32>,
    %c0_13 = arith.constant 0 : index
    %c0_14 = arith.constant 0 : index
    %34 = vector.load %arg5[%c0_13, %c0_14] : memref<8x64xbf16, #tpu.memory_space<vmem>>, vector<8x64xbf16>
    %cst_15 = arith.constant dense<0.000000e+00> : vector<8x128xf32>
    %35 = tpu.matmul %34, %28, %cst_15 {dimension_numbers = #tpu.dot_dimension_numbers<[1], [1], [0], [0], [0, 0, 1, 0], [], []>} : vector<8x64xbf16>, vector<128x64xbf16>, vector<8x128xf32> -> vector<8x128xf32>
    %cst_16 = arith.constant dense<0.000000e+00> : vector<128xf32>
    %36 = vector.multi_reduction <add>, %35, %cst_16 [0] : vector<8x128xf32> to vector<128xf32>
    %37 = vector.shape_cast %36 : vector<128xf32> to vector<1x128xf32>
    %38 = arith.fptosi %37 : vector<1x128xf32> to vector<1x128xi32>
    %39 = vector.shape_cast %38 : vector<1x128xi32> to vector<1x1x128xi32>
    %c0_17 = arith.constant 0 : index
    %c0_18 = arith.constant 0 : index
    %c0_19 = arith.constant 0 : index
    %40 = vector.load %arg7[%c0_17, %c0_18, %c0_19] : memref<1x1x128xi32, #tpu.memory_space<vmem>>, vector<1x1x128xi32>
    tpu.vector_store %arg7[%c0_17, %c0_18, %c0_19], %39 {strides = array<i32>} : memref<1x1x128xi32, #tpu.memory_space<vmem>>, vector<1x1x128xi32>,
    %41 = arith.extf %28 : vector<128x64xbf16> to vector<128x64xf32>
    %cst_20 = arith.constant dense<0.000000e+00> : vector<64xf32>
    %42 = vector.multi_reduction <add>, %41, %cst_20 [0] : vector<128x64xf32> to vector<64xf32>
    %43 = vector.shape_cast %42 : vector<64xf32> to vector<1x64xf32>
    %44 = vector.shape_cast %43 : vector<1x64xf32> to vector<1x1x64xf32>
    %c0_21 = arith.constant 0 : index
    %c0_22 = arith.constant 0 : index
    %c0_23 = arith.constant 0 : index
    %45 = vector.load %arg8[%c0_21, %c0_22, %c0_23] : memref<1x1x64xf32, #tpu.memory_space<vmem>>, vector<1x1x64xf32>
    tpu.vector_store %arg8[%c0_21, %c0_22, %c0_23], %44 {strides = array<i32>} : memref<1x1x64xf32, #tpu.memory_space<vmem>>, vector<1x1x64xf32>,
    return
  }
  func.func @transform_0(%arg0: i32) -> (i32, i32) {
    %c0_i32 = arith.constant 0 : i32
    %c0_i32_0 = arith.constant 0 : i32
    return %arg0, %c0_i32 : i32, i32
  }
  func.func @transform_1(%arg0: i32) -> (i32, i32) {
    %c0_i32 = arith.constant 0 : i32
    %c0_i32_0 = arith.constant 0 : i32
    %c0_i32_1 = arith.constant 0 : i32
    return %c0_i32, %c0_i32_0 : i32, i32
  }
  func.func @transform_2(%arg0: i32) -> (i32, i32) {
    %c0_i32 = arith.constant 0 : i32
    %c0_i32_0 = arith.constant 0 : i32
    %c0_i32_1 = arith.constant 0 : i32
    return %c0_i32, %c0_i32_0 : i32, i32
  }
  func.func @transform_3(%arg0: i32) -> (i32, i32) {
    %c0_i32 = arith.constant 0 : i32
    %c0_i32_0 = arith.constant 0 : i32
    %c0_i32_1 = arith.constant 0 : i32
    return %c0_i32, %c0_i32_0 : i32, i32
  }
  func.func @transform_4(%arg0: i32) -> (i32, i32) {
    %c0_i32 = arith.constant 0 : i32
    %c0_i32_0 = arith.constant 0 : i32
    %c0_i32_1 = arith.constant 0 : i32
    return %c0_i32, %c0_i32_0 : i32, i32
  }
  func.func @transform_5(%arg0: i32) -> (i32, i32) {
    %c0_i32 = arith.constant 0 : i32
    %c0_i32_0 = arith.constant 0 : i32
    return %arg0, %c0_i32 : i32, i32
  }
  func.func @transform_6(%arg0: i32) -> (i32, i32, i32) {
    %c0_i32 = arith.constant 0 : i32
    %c0_i32_0 = arith.constant 0 : i32
    %c0_i32_1 = arith.constant 0 : i32
    return %arg0, %c0_i32, %c0_i32_0 : i32, i32, i32
  }
  func.func @transform_7(%arg0: i32) -> (i32, i32, i32) {
    %c0_i32 = arith.constant 0 : i32
    %c0_i32_0 = arith.constant 0 : i32
    %c0_i32_1 = arith.constant 0 : i32
    return %arg0, %c0_i32, %c0_i32_0 : i32, i32, i32
  }
}

</mosaic_0001>

<llo_original>
// kernel: vector_quantize_forward.1
$region0: #{vector_quantize_forward.1}
  #allocation0 [shape = 'u32[]', space=smem, size = 0x4, offset = 0x4, fixed_abs, tag = 'smem constant byte address 0x4 - core index']
  #allocation1 [shape = 'u32[72,128]{1,0:T(1,128)}', space=vmem, size = 0x9000, scoped, tag = 'internal scratch']
  %s0 = inlined_call_operand.vmem [shape: f32[16,32], index: 0, kind: input, shape index: {}]
  %s1 = inlined_call_operand.vmem [shape: bf16[64,32], index: 1, kind: input, shape index: {}]
  %s2 = inlined_call_operand.vmem [shape: bf16[64,32], index: 2, kind: input, shape index: {}]
  %s3 = inlined_call_operand.vmem [shape: f32[1,64], index: 3, kind: input, shape index: {}]
  %s4 = inlined_call_operand.vmem [shape: bf16[8,64], index: 4, kind: input, shape index: {}]
  %s5 = inlined_call_operand.hbm [shape: f32[16,32], index: 5, kind: output, shape index: {0}]
  %s6 = inlined_call_operand.vmem [shape: s32[1,1,128], index: 6, kind: output, shape index: {1}]
  %s7 = inlined_call_operand.vmem [shape: f32[1,1,64], index: 7, kind: output, shape index: {2}]
  %8 = xla_tuple %s5, %s6, %s7
  %s9 = sld [smem:[#allocation0]]
  $region46: #{vector_quantize_forward.1} parent=0
    _
  %s11 = ssub.s32 1, %s9
  %s12 = scalar_select 0, %s11, %s9
  $region1: #{vector_quantize_forward.1} parent=0
    #allocation2 [shape = 'u8[65536]{0}', space=vmem, size = 0x10000, scoped, tag = 'output window, operand 0, single buffered']
    #allocation3 [shape = 's32[1]{0}', space=sflag, size = 0x4, scoped, tag = 'scoped memory for vector_quantize_forward.1']
    %13 = vsyncpa [#allocation3], 0
    // Predicated region
    $region2: #{vector_quantize_forward.1} parent=1 // pred_check
      _
    $region3: #{vector_quantize_forward.1} parent=1 // pred_check_branch
      %15 = sbr.rel (0) target = $region5
    $region4: #{vector_quantize_forward.1} parent=1 // pred_region
      _
    $region5: #{vector_quantize_forward.1} parent=1 // pred_fallthru
      _
    // Predicated region
    $region6: #{vector_quantize_forward.1} parent=1 // pred_check
      _
    $region7: #{vector_quantize_forward.1} parent=1 // pred_check_branch
      %17 = sbr.rel (0) target = $region9
    $region8: #{vector_quantize_forward.1} parent=1 // pred_region
      _
    $region9: #{vector_quantize_forward.1} parent=1 // pred_fallthru
      _
    // Predicated region
    $region10: #{vector_quantize_forward.1} parent=1 // pred_check
      _
    $region11: #{vector_quantize_forward.1} parent=1 // pred_check_branch
      %19 = sbr.rel (0) target = $region13
    $region12: #{vector_quantize_forward.1} parent=1 // pred_region
      _
    $region13: #{vector_quantize_forward.1} parent=1 // pred_fallthru
      _
    // Predicated region
    $region14: #{vector_quantize_forward.1} parent=1 // pred_check
      _
    $region15: #{vector_quantize_forward.1} parent=1 // pred_check_branch
      %21 = sbr.rel (0) target = $region17
    $region16: #{vector_quantize_forward.1} parent=1 // pred_region
      _
    $region17: #{vector_quantize_forward.1} parent=1 // pred_fallthru
      _
    // Predicated region
    $region18: #{vector_quantize_forward.1} parent=1 // pred_check
      _
    $region19: #{vector_quantize_forward.1} parent=1 // pred_check_branch
      %23 = sbr.rel (0) target = $region21
    $region20: #{vector_quantize_forward.1} parent=1 // pred_region
      _
    $region21: #{vector_quantize_forward.1} parent=1 // pred_fallthru
      _
    %v25 = vld [vmem:[%s0] sm:$0xff]
    %v26 = vld [vmem:[%s0 + $0x8] sm:$0xff]
    %v27 = vld [vmem:[%s0 + $0x10] sm:$0xff]
    %v28 = vld [vmem:[%s0 + $0x18] sm:$0xff]
    %v29 = vld [vmem:[%s0 + $0x20] sm:$0xff]
    %v30 = vld [vmem:[%s0 + $0x28] sm:$0xff]
    %v31 = vld [vmem:[%s0 + $0x30] sm:$0xff]
    %v32 = vld [vmem:[%s0 + $0x38] sm:$0xff]
    %v33 = vld [vmem:[%s0 + $0x40] sm:$0xff]
    %v34 = vld [vmem:[%s0 + $0x48] sm:$0xff]
    %v35 = vld [vmem:[%s0 + $0x50] sm:$0xff]
    %v36 = vld [vmem:[%s0 + $0x58] sm:$0xff]
    %v37 = vld [vmem:[%s0 + $0x60] sm:$0xff]
    %v38 = vld [vmem:[%s0 + $0x68] sm:$0xff]
    %v39 = vld [vmem:[%s0 + $0x70] sm:$0xff]
    %v40 = vld [vmem:[%s0 + $0x78] sm:$0xff]
    %v41 = vpack.c.bf16 %v26, %v25
    %v42 = vpack.c.bf16 %v28, %v27
    %v43 = vpack.c.bf16 %v30, %v29
    %v44 = vpack.c.bf16 %v32, %v31
    %v45 = vpack.c.bf16 %v34, %v33
    %v46 = vpack.c.bf16 %v36, %v35
    %v47 = vpack.c.bf16 %v38, %v37
    %v48 = vpack.c.bf16 %v40, %v39
    %v49 = vld [vmem:[%s1] sm:$0xf]
    %v50 = vld [vmem:[%s1 + $0x4] sm:$0xf]
    %v51 = vld [vmem:[%s1 + $0x8] sm:$0xf]
    %v52 = vld [vmem:[%s1 + $0xc] sm:$0xf]
    %v53 = vld [vmem:[%s1 + $0x10] sm:$0xf]
    %v54 = vld [vmem:[%s1 + $0x14] sm:$0xf]
    %v55 = vld [vmem:[%s1 + $0x18] sm:$0xf]
    %v56 = vld [vmem:[%s1 + $0x1c] sm:$0xf]
    %v65 = vunpack.c.l.b16 %v49
    %v66 = vunpack.c.l.b16 %v50
    %v67 = vunpack.c.l.b16 %v51
    %v68 = vunpack.c.l.b16 %v52
    %v69 = vunpack.c.l.b16 %v53
    %v70 = vunpack.c.l.b16 %v54
    %v71 = vunpack.c.l.b16 %v55
    %v72 = vunpack.c.l.b16 %v56
    %v73 = vpack.c.b16 %v66, %v65
    %v74 = vpack.c.b16 %v68, %v67
    %v75 = vpack.c.b16 %v70, %v69
    %v76 = vpack.c.b16 %v72, %v71
    %vm77 = vcmask 261120
    %v79 = vsel %vm77, %v41, 0
    %v82 = vsel %vm77, %v42, 0
    %v85 = vsel %vm77, %v43, 0
    %v88 = vsel %vm77, %v44, 0
    %v91 = vsel %vm77, %v45, 0
    %v94 = vsel %vm77, %v46, 0
    %v97 = vsel %vm77, %v47, 0
    %v100 = vsel %vm77, %v48, 0
    %v103 = vsel %vm77, %v73, 0
    %v106 = vsel %vm77, %v74, 0
    %v109 = vsel %vm77, %v75, 0
    %v112 = vsel %vm77, %v76, 0
    %114 = vmatpush.bf16.xpose.msra.mxu0 0
    %115 = vmatpush.bf16.xpose.msra.mxu0 0
    %116 = vmatpush.bf16.xpose.msra.mxu0 0
    %117 = vmatpush.bf16.xpose.msra.mxu0 0
    %118 = vmatpush.bf16.xpose.msra.mxu0 %v112
    %119 = vmatpush.bf16.xpose.msra.mxu0 %v109
    %120 = vmatpush.bf16.xpose.msra.mxu0 %v106
    %121 = vmatpush.bf16.xpose.msra.mxu0 %v103
    %122 = vmatmul.bf16.gmra.mxu0 %v79
    %v123 = vpop.f32.mrf.mxu0
    %v124 = vadd.f32 0.0, %v123
    %v125 = vpop.f32.mrf.mxu0
    %v126 = vadd.f32 0.0, %v125
    %127 = vmatmul.bf16.gmra.mxu0 %v82
    %v128 = vpop.f32.mrf.mxu0
    %v129 = vadd.f32 0.0, %v128
    %v130 = vpop.f32.mrf.mxu0
    %v131 = vadd.f32 0.0, %v130
    %132 = vmatmul.bf16.gmra.mxu0 %v85
    %v133 = vpop.f32.mrf.mxu0
    %v134 = vadd.f32 0.0, %v133
    %v135 = vpop.f32.mrf.mxu0
    %v136 = vadd.f32 0.0, %v135
    %137 = vmatmul.bf16.gmra.mxu0 %v88
    %v138 = vpop.f32.mrf.mxu0
    %v139 = vadd.f32 0.0, %v138
    %v140 = vpop.f32.mrf.mxu0
    %v141 = vadd.f32 0.0, %v140
    %142 = vmatmul.bf16.gmra.mxu0 %v91
    %v143 = vpop.f32.mrf.mxu0
    %v144 = vadd.f32 0.0, %v143
    %v145 = vpop.f32.mrf.mxu0
    %v146 = vadd.f32 0.0, %v145
    %147 = vmatmul.bf16.gmra.mxu0 %v94
    %v148 = vpop.f32.mrf.mxu0
    %v149 = vadd.f32 0.0, %v148
    %v150 = vpop.f32.mrf.mxu0
    %v151 = vadd.f32 0.0, %v150
    %152 = vmatmul.bf16.gmra.mxu0 %v97
    %v153 = vpop.f32.mrf.mxu0
    %v154 = vadd.f32 0.0, %v153
    %v155 = vpop.f32.mrf.mxu0
    %v156 = vadd.f32 0.0, %v155
    %157 = vmatmul.bf16.gmra.mxu0 %v100
    %v158 = vpop.f32.mrf.mxu0
    %v159 = vadd.f32 0.0, %v158
    %v160 = vpop.f32.mrf.mxu0
    %v161 = vadd.f32 0.0, %v160
    %162 = vdwg.mxu0
    %v163 = vld [vmem:[%s3] sm:$0x1]
    %v165 = vperm.slane %v163, 0
    %v167 = vsub.f32 %v124, %v165
    %v168 = vsub.f32 %v126, %v165
    %v169 = vsub.f32 %v129, %v165
    %v170 = vsub.f32 %v131, %v165
    %v171 = vsub.f32 %v134, %v165
    %v172 = vsub.f32 %v136, %v165
    %v173 = vsub.f32 %v139, %v165
    %v174 = vsub.f32 %v141, %v165
    %v175 = vsub.f32 %v144, %v165
    %v176 = vsub.f32 %v146, %v165
    %v177 = vsub.f32 %v149, %v165
    %v178 = vsub.f32 %v151, %v165
    %v179 = vsub.f32 %v154, %v165
    %v180 = vsub.f32 %v156, %v165
    %v181 = vsub.f32 %v159, %v165
    %v182 = vsub.f32 %v161, %v165
    %v183 = vlaneseq
    %v184 = vand.u32 %v183, 127
    %vm185 = vcmask 523264
    %v186 = vsel %vm185, %v167, -inf
    %187 = vmax.xlane.f32.xlu0 %v186
    %v188 = vpop.xlane.xlu0 %187
    %v189 = vsel %vm185, %v168, -inf
    %190 = vmax.xlane.f32.xlu0 %v189
    %v191 = vpop.xlane.xlu0 %190
    %v192 = vsel %vm185, %v169, -inf
    %193 = vmax.xlane.f32.xlu0 %v192
    %v194 = vpop.xlane.xlu0 %193
    %v195 = vsel %vm185, %v170, -inf
    %196 = vmax.xlane.f32.xlu0 %v195
    %v197 = vpop.xlane.xlu0 %196
    %v198 = vsel %vm185, %v171, -inf
    %199 = vmax.xlane.f32.xlu0 %v198
    %v200 = vpop.xlane.xlu0 %199
    %v201 = vsel %vm185, %v172, -inf
    %202 = vmax.xlane.f32.xlu0 %v201
    %v203 = vpop.xlane.xlu0 %202
    %v204 = vsel %vm185, %v173, -inf
    %205 = vmax.xlane.f32.xlu0 %v204
    %v206 = vpop.xlane.xlu0 %205
    %v207 = vsel %vm185, %v174, -inf
    %208 = vmax.xlane.f32.xlu0 %v207
    %v209 = vpop.xlane.xlu0 %208
    %v210 = vsel %vm185, %v175, -inf
    %211 = vmax.xlane.f32.xlu0 %v210
    %v212 = vpop.xlane.xlu0 %211
    %v213 = vsel %vm185, %v176, -inf
    %214 = vmax.xlane.f32.xlu0 %v213
    %v215 = vpop.xlane.xlu0 %214
    %v216 = vsel %vm185, %v177, -inf
    %217 = vmax.xlane.f32.xlu0 %v216
    %v218 = vpop.xlane.xlu0 %217
    %v219 = vsel %vm185, %v178, -inf
    %220 = vmax.xlane.f32.xlu0 %v219
    %v221 = vpop.xlane.xlu0 %220
    %v222 = vsel %vm185, %v179, -inf
    %223 = vmax.xlane.f32.xlu0 %v222
    %v224 = vpop.xlane.xlu0 %223
    %v225 = vsel %vm185, %v180, -inf
    %226 = vmax.xlane.f32.xlu0 %v225
    %v227 = vpop.xlane.xlu0 %226
    %v228 = vsel %vm185, %v181, -inf
    %229 = vmax.xlane.f32.xlu0 %v228
    %v230 = vpop.xlane.xlu0 %229
    %v231 = vsel %vm185, %v182, -inf
    %232 = vmax.xlane.f32.xlu0 %v231
    %v233 = vpop.xlane.xlu0 %232
    %vm234 = vcmp.eq.f32.partialorder %v167, %v188
    %vm235 = vcmp.eq.f32.partialorder %v168, %v191
    %vm236 = vcmp.eq.f32.partialorder %v169, %v194
    %vm237 = vcmp.eq.f32.partialorder %v170, %v197
    %vm238 = vcmp.eq.f32.partialorder %v171, %v200
    %vm239 = vcmp.eq.f32.partialorder %v172, %v203
    %vm240 = vcmp.eq.f32.partialorder %v173, %v206
    %vm241 = vcmp.eq.f32.partialorder %v174, %v209
    %vm242 = vcmp.eq.f32.partialorder %v175, %v212
    %vm243 = vcmp.eq.f32.partialorder %v176, %v215
    %vm244 = vcmp.eq.f32.partialorder %v177, %v218
    %vm245 = vcmp.eq.f32.partialorder %v178, %v221
    %vm246 = vcmp.eq.f32.partialorder %v179, %v224
    %vm247 = vcmp.eq.f32.partialorder %v180, %v227
    %vm248 = vcmp.eq.f32.partialorder %v181, %v230
    %vm249 = vcmp.eq.f32.partialorder %v182, %v233
    %v250 = vsel %vm234, %v184, 63
    %v251 = vsel %vm235, %v184, 63
    %v252 = vsel %vm236, %v184, 63
    %v253 = vsel %vm237, %v184, 63
    %v254 = vsel %vm238, %v184, 63
    %v255 = vsel %vm239, %v184, 63
    %v256 = vsel %vm240, %v184, 63
    %v257 = vsel %vm241, %v184, 63
    %v258 = vsel %vm242, %v184, 63
    %v259 = vsel %vm243, %v184, 63
    %v260 = vsel %vm244, %v184, 63
    %v261 = vsel %vm245, %v184, 63
    %v262 = vsel %vm246, %v184, 63
    %v263 = vsel %vm247, %v184, 63
    %v264 = vsel %vm248, %v184, 63
    %v265 = vsel %vm249, %v184, 63
    %v266 = vsel %vm185, %v250, 2147483647
    %v267 = vand.u32 %v266, 65535
    %v268 = vshra.s32 %v266, 16
    %v269 = vcvt.s32.f32 %v267
    %v270 = vcvt.s32.f32 %v268
    %271 = vmin.xlane.f32.xlu0 %v270
    %v272 = vpop.xlane.xlu0 %271
    %vm273 = vcmp.eq.f32.partialorder %v270, %v272
    %v274 = vsel %vm273, %v269, inf
    %275 = vmin.xlane.f32.xlu0 %v274
    %v276 = vpop.xlane.xlu0 %275
    %v277 = vcvt.f32.s32 %v276
    %v278 = vcvt.f32.s32 %v272
    %v279 = vshll.u32 %v278, 16
    %v280 = vadd.s32 %v279, %v277
    %v281 = vsel %vm185, %v251, 2147483647
    %v282 = vand.u32 %v281, 65535
    %v283 = vshra.s32 %v281, 16
    %v284 = vcvt.s32.f32 %v282
    %v285 = vcvt.s32.f32 %v283
    %286 = vmin.xlane.f32.xlu0 %v285
    %v287 = vpop.xlane.xlu0 %286
    %vm288 = vcmp.eq.f32.partialorder %v285, %v287
    %v289 = vsel %vm288, %v284, inf
    %290 = vmin.xlane.f32.xlu0 %v289
    %v291 = vpop.xlane.xlu0 %290
    %v292 = vcvt.f32.s32 %v291
    %v293 = vcvt.f32.s32 %v287
    %v294 = vshll.u32 %v293, 16
    %v295 = vadd.s32 %v294, %v292
    %v296 = vsel %vm185, %v252, 2147483647
    %v297 = vand.u32 %v296, 65535
    %v298 = vshra.s32 %v296, 16
    %v299 = vcvt.s32.f32 %v297
    %v300 = vcvt.s32.f32 %v298
    %301 = vmin.xlane.f32.xlu0 %v300
    %v302 = vpop.xlane.xlu0 %301
    %vm303 = vcmp.eq.f32.partialorder %v300, %v302
    %v304 = vsel %vm303, %v299, inf
    %305 = vmin.xlane.f32.xlu0 %v304
    %v306 = vpop.xlane.xlu0 %305
    %v307 = vcvt.f32.s32 %v306
    %v308 = vcvt.f32.s32 %v302
    %v309 = vshll.u32 %v308, 16
    %v310 = vadd.s32 %v309, %v307
    %v311 = vsel %vm185, %v253, 2147483647
    %v312 = vand.u32 %v311, 65535
    %v313 = vshra.s32 %v311, 16
    %v314 = vcvt.s32.f32 %v312
    %v315 = vcvt.s32.f32 %v313
    %316 = vmin.xlane.f32.xlu0 %v315
    %v317 = vpop.xlane.xlu0 %316
    %vm318 = vcmp.eq.f32.partialorder %v315, %v317
    %v319 = vsel %vm318, %v314, inf
    %320 = vmin.xlane.f32.xlu0 %v319
    %v321 = vpop.xlane.xlu0 %320
    %v322 = vcvt.f32.s32 %v321
    %v323 = vcvt.f32.s32 %v317
    %v324 = vshll.u32 %v323, 16
    %v325 = vadd.s32 %v324, %v322
    %v326 = vsel %vm185, %v254, 2147483647
    %v327 = vand.u32 %v326, 65535
    %v328 = vshra.s32 %v326, 16
    %v329 = vcvt.s32.f32 %v327
    %v330 = vcvt.s32.f32 %v328
    %331 = vmin.xlane.f32.xlu0 %v330
    %v332 = vpop.xlane.xlu0 %331
    %vm333 = vcmp.eq.f32.partialorder %v330, %v332
    %v334 = vsel %vm333, %v329, inf
    %335 = vmin.xlane.f32.xlu0 %v334
    %v336 = vpop.xlane.xlu0 %335
    %v337 = vcvt.f32.s32 %v336
    %v338 = vcvt.f32.s32 %v332
    %v339 = vshll.u32 %v338, 16
    %v340 = vadd.s32 %v339, %v337
    %v341 = vsel %vm185, %v255, 2147483647
    %v342 = vand.u32 %v341, 65535
    %v343 = vshra.s32 %v341, 16
    %v344 = vcvt.s32.f32 %v342
    %v345 = vcvt.s32.f32 %v343
    %346 = vmin.xlane.f32.xlu0 %v345
    %v347 = vpop.xlane.xlu0 %346
    %vm348 = vcmp.eq.f32.partialorder %v345, %v347
    %v349 = vsel %vm348, %v344, inf
    %350 = vmin.xlane.f32.xlu0 %v349
    %v351 = vpop.xlane.xlu0 %350
    %v352 = vcvt.f32.s32 %v351
    %v353 = vcvt.f32.s32 %v347
    %v354 = vshll.u32 %v353, 16
    %v355 = vadd.s32 %v354, %v352
    %v356 = vsel %vm185, %v256, 2147483647
    %v357 = vand.u32 %v356, 65535
    %v358 = vshra.s32 %v356, 16
    %v359 = vcvt.s32.f32 %v357
    %v360 = vcvt.s32.f32 %v358
    %361 = vmin.xlane.f32.xlu0 %v360
    %v362 = vpop.xlane.xlu0 %361
    %vm363 = vcmp.eq.f32.partialorder %v360, %v362
    %v364 = vsel %vm363, %v359, inf
    %365 = vmin.xlane.f32.xlu0 %v364
    %v366 = vpop.xlane.xlu0 %365
    %v367 = vcvt.f32.s32 %v366
    %v368 = vcvt.f32.s32 %v362
    %v369 = vshll.u32 %v368, 16
    %v370 = vadd.s32 %v369, %v367
    %v371 = vsel %vm185, %v257, 2147483647
    %v372 = vand.u32 %v371, 65535
    %v373 = vshra.s32 %v371, 16
    %v374 = vcvt.s32.f32 %v372
    %v375 = vcvt.s32.f32 %v373
    %376 = vmin.xlane.f32.xlu0 %v375
    %v377 = vpop.xlane.xlu0 %376
    %vm378 = vcmp.eq.f32.partialorder %v375, %v377
    %v379 = vsel %vm378, %v374, inf
    %380 = vmin.xlane.f32.xlu0 %v379
    %v381 = vpop.xlane.xlu0 %380
    %v382 = vcvt.f32.s32 %v381
    %v383 = vcvt.f32.s32 %v377
    %v384 = vshll.u32 %v383, 16
    %v385 = vadd.s32 %v384, %v382
    %v386 = vsel %vm185, %v258, 2147483647
    %v387 = vand.u32 %v386, 65535
    %v388 = vshra.s32 %v386, 16
    %v389 = vcvt.s32.f32 %v387
    %v390 = vcvt.s32.f32 %v388
    %391 = vmin.xlane.f32.xlu0 %v390
    %v392 = vpop.xlane.xlu0 %391
    %vm393 = vcmp.eq.f32.partialorder %v390, %v392
    %v394 = vsel %vm393, %v389, inf
    %395 = vmin.xlane.f32.xlu0 %v394
    %v396 = vpop.xlane.xlu0 %395
    %v397 = vcvt.f32.s32 %v396
    %v398 = vcvt.f32.s32 %v392
    %v399 = vshll.u32 %v398, 16
    %v400 = vadd.s32 %v399, %v397
    %v401 = vsel %vm185, %v259, 2147483647
    %v402 = vand.u32 %v401, 65535
    %v403 = vshra.s32 %v401, 16
    %v404 = vcvt.s32.f32 %v402
    %v405 = vcvt.s32.f32 %v403
    %406 = vmin.xlane.f32.xlu0 %v405
    %v407 = vpop.xlane.xlu0 %406
    %vm408 = vcmp.eq.f32.partialorder %v405, %v407
    %v409 = vsel %vm408, %v404, inf
    %410 = vmin.xlane.f32.xlu0 %v409
    %v411 = vpop.xlane.xlu0 %410
    %v412 = vcvt.f32.s32 %v411
    %v413 = vcvt.f32.s32 %v407
    %v414 = vshll.u32 %v413, 16
    %v415 = vadd.s32 %v414, %v412
    %v416 = vsel %vm185, %v260, 2147483647
    %v417 = vand.u32 %v416, 65535
    %v418 = vshra.s32 %v416, 16
    %v419 = vcvt.s32.f32 %v417
    %v420 = vcvt.s32.f32 %v418
    %421 = vmin.xlane.f32.xlu0 %v420
    %v422 = vpop.xlane.xlu0 %421
    %vm423 = vcmp.eq.f32.partialorder %v420, %v422
    %v424 = vsel %vm423, %v419, inf
    %425 = vmin.xlane.f32.xlu0 %v424
    %v426 = vpop.xlane.xlu0 %425
    %v427 = vcvt.f32.s32 %v426
    %v428 = vcvt.f32.s32 %v422
    %v429 = vshll.u32 %v428, 16
    %v430 = vadd.s32 %v429, %v427
    %v431 = vsel %vm185, %v261, 2147483647
    %v432 = vand.u32 %v431, 65535
    %v433 = vshra.s32 %v431, 16
    %v434 = vcvt.s32.f32 %v432
    %v435 = vcvt.s32.f32 %v433
    %436 = vmin.xlane.f32.xlu0 %v435
    %v437 = vpop.xlane.xlu0 %436
    %vm438 = vcmp.eq.f32.partialorder %v435, %v437
    %v439 = vsel %vm438, %v434, inf
    %440 = vmin.xlane.f32.xlu0 %v439
    %v441 = vpop.xlane.xlu0 %440
    %v442 = vcvt.f32.s32 %v441
    %v443 = vcvt.f32.s32 %v437
    %v444 = vshll.u32 %v443, 16
    %v445 = vadd.s32 %v444, %v442
    %v446 = vsel %vm185, %v262, 2147483647
    %v447 = vand.u32 %v446, 65535
    %v448 = vshra.s32 %v446, 16
    %v449 = vcvt.s32.f32 %v447
    %v450 = vcvt.s32.f32 %v448
    %451 = vmin.xlane.f32.xlu0 %v450
    %v452 = vpop.xlane.xlu0 %451
    %vm453 = vcmp.eq.f32.partialorder %v450, %v452
    %v454 = vsel %vm453, %v449, inf
    %455 = vmin.xlane.f32.xlu0 %v454
    %v456 = vpop.xlane.xlu0 %455
    %v457 = vcvt.f32.s32 %v456
    %v458 = vcvt.f32.s32 %v452
    %v459 = vshll.u32 %v458, 16
    %v460 = vadd.s32 %v459, %v457
    %v461 = vsel %vm185, %v263, 2147483647
    %v462 = vand.u32 %v461, 65535
    %v463 = vshra.s32 %v461, 16
    %v464 = vcvt.s32.f32 %v462
    %v465 = vcvt.s32.f32 %v463
    %466 = vmin.xlane.f32.xlu0 %v465
    %v467 = vpop.xlane.xlu0 %466
    %vm468 = vcmp.eq.f32.partialorder %v465, %v467
    %v469 = vsel %vm468, %v464, inf
    %470 = vmin.xlane.f32.xlu0 %v469
    %v471 = vpop.xlane.xlu0 %470
    %v472 = vcvt.f32.s32 %v471
    %v473 = vcvt.f32.s32 %v467
    %v474 = vshll.u32 %v473, 16
    %v475 = vadd.s32 %v474, %v472
    %v476 = vsel %vm185, %v264, 2147483647
    %v477 = vand.u32 %v476, 65535
    %v478 = vshra.s32 %v476, 16
    %v479 = vcvt.s32.f32 %v477
    %v480 = vcvt.s32.f32 %v478
    %481 = vmin.xlane.f32.xlu0 %v480
    %v482 = vpop.xlane.xlu0 %481
    %vm483 = vcmp.eq.f32.partialorder %v480, %v482
    %v484 = vsel %vm483, %v479, inf
    %485 = vmin.xlane.f32.xlu0 %v484
    %v486 = vpop.xlane.xlu0 %485
    %v487 = vcvt.f32.s32 %v486
    %v488 = vcvt.f32.s32 %v482
    %v489 = vshll.u32 %v488, 16
    %v490 = vadd.s32 %v489, %v487
    %v491 = vsel %vm185, %v265, 2147483647
    %v492 = vand.u32 %v491, 65535
    %v493 = vshra.s32 %v491, 16
    %v494 = vcvt.s32.f32 %v492
    %v495 = vcvt.s32.f32 %v493
    %496 = vmin.xlane.f32.xlu0 %v495
    %v497 = vpop.xlane.xlu0 %496
    %vm498 = vcmp.eq.f32.partialorder %v495, %v497
    %v499 = vsel %vm498, %v494, inf
    %500 = vmin.xlane.f32.xlu0 %v499
    %v501 = vpop.xlane.xlu0 %500
    %v502 = vcvt.f32.s32 %v501
    %v503 = vcvt.f32.s32 %v497
    %v504 = vshll.u32 %v503, 16
    %v505 = vadd.s32 %v504, %v502
    %v506 = vlaneseq
    %v507 = vshrl.u32 %v506, 7
    %v508 = vadd.s32 %v507, 8
    %v509 = vadd.s32 %v507, 16
    %v510 = vadd.s32 %v507, 24
    %v511 = vadd.s32 %v507, 32
    %v512 = vadd.s32 %v507, 40
    %v513 = vadd.s32 %v507, 48
    %v514 = vadd.s32 %v507, 56
    %v515 = vadd.s32 %v507, 64
    %v516 = vadd.s32 %v507, 72
    %v517 = vadd.s32 %v507, 80
    %v518 = vadd.s32 %v507, 88
    %v519 = vadd.s32 %v507, 96
    %v520 = vadd.s32 %v507, 104
    %v521 = vadd.s32 %v507, 112
    %v522 = vadd.s32 %v507, 120
    %s523 = smul.u32 0, 128
    %v524 = vstv %s523
    %v525 = vadd.s32 %v524, %v507
    %v526 = vadd.s32 %v524, %v508
    %v527 = vadd.s32 %v524, %v509
    %v528 = vadd.s32 %v524, %v510
    %v529 = vadd.s32 %v524, %v511
    %v530 = vadd.s32 %v524, %v512
    %v531 = vadd.s32 %v524, %v513
    %v532 = vadd.s32 %v524, %v514
    %v533 = vadd.s32 %v524, %v515
    %v534 = vadd.s32 %v524, %v516
    %v535 = vadd.s32 %v524, %v517
    %v536 = vadd.s32 %v524, %v518
    %v537 = vadd.s32 %v524, %v519
    %v538 = vadd.s32 %v524, %v520
    %v539 = vadd.s32 %v524, %v521
    %v540 = vadd.s32 %v524, %v522
    %vm541 = vcmp.lt.s32.totalorder %v525, 16
    %vm542 = vcmp.lt.s32.totalorder %v526, 16
    %vm543 = vcmp.lt.s32.totalorder %v527, 16
    %vm544 = vcmp.lt.s32.totalorder %v528, 16
    %vm545 = vcmp.lt.s32.totalorder %v529, 16
    %vm546 = vcmp.lt.s32.totalorder %v530, 16
    %vm547 = vcmp.lt.s32.totalorder %v531, 16
    %vm548 = vcmp.lt.s32.totalorder %v532, 16
    %vm549 = vcmp.lt.s32.totalorder %v533, 16
    %vm550 = vcmp.lt.s32.totalorder %v534, 16
    %vm551 = vcmp.lt.s32.totalorder %v535, 16
    %vm552 = vcmp.lt.s32.totalorder %v536, 16
    %vm553 = vcmp.lt.s32.totalorder %v537, 16
    %vm554 = vcmp.lt.s32.totalorder %v538, 16
    %vm555 = vcmp.lt.s32.totalorder %v539, 16
    %vm556 = vcmp.lt.s32.totalorder %v540, 16
    %v557 = vsel %vm541, %v280, 64
    %v558 = vsel %vm542, %v295, 64
    %v559 = vsel %vm543, %v310, 64
    %v560 = vsel %vm544, %v325, 64
    %v561 = vsel %vm545, %v340, 64
    %v562 = vsel %vm546, %v355, 64
    %v563 = vsel %vm547, %v370, 64
    %v564 = vsel %vm548, %v385, 64
    %v565 = vsel %vm549, %v400, 64
    %v566 = vsel %vm550, %v415, 64
    %v567 = vsel %vm551, %v430, 64
    %v568 = vsel %vm552, %v445, 64
    %v569 = vsel %vm553, %v460, 64
    %v570 = vsel %vm554, %v475, 64
    %v571 = vsel %vm555, %v490, 64
    %v572 = vsel %vm556, %v505, 64
    %vm573 = vcmp.eq.s32.totalorder %v184, %v557
    %vm574 = vcmp.eq.s32.totalorder %v184, %v558
    %vm575 = vcmp.eq.s32.totalorder %v184, %v559
    %vm576 = vcmp.eq.s32.totalorder %v184, %v560
    %vm577 = vcmp.eq.s32.totalorder %v184, %v561
    %vm578 = vcmp.eq.s32.totalorder %v184, %v562
    %vm579 = vcmp.eq.s32.totalorder %v184, %v563
    %vm580 = vcmp.eq.s32.totalorder %v184, %v564
    %vm581 = vcmp.eq.s32.totalorder %v184, %v565
    %vm582 = vcmp.eq.s32.totalorder %v184, %v566
    %vm583 = vcmp.eq.s32.totalorder %v184, %v567
    %vm584 = vcmp.eq.s32.totalorder %v184, %v568
    %vm585 = vcmp.eq.s32.totalorder %v184, %v569
    %vm586 = vcmp.eq.s32.totalorder %v184, %v570
    %vm587 = vcmp.eq.s32.totalorder %v184, %v571
    %vm588 = vcmp.eq.s32.totalorder %v184, %v572
    %v589 = vsel %vm573, 1, 0
    %v590 = vsel %vm574, 1, 0
    %v591 = vsel %vm575, 1, 0
    %v592 = vsel %vm576, 1, 0
    %v593 = vsel %vm577, 1, 0
    %v594 = vsel %vm578, 1, 0
    %v595 = vsel %vm579, 1, 0
    %v596 = vsel %vm580, 1, 0
    %v597 = vsel %vm581, 1, 0
    %v598 = vsel %vm582, 1, 0
    %v599 = vsel %vm583, 1, 0
    %v600 = vsel %vm584, 1, 0
    %v601 = vsel %vm585, 1, 0
    %v602 = vsel %vm586, 1, 0
    %v603 = vsel %vm587, 1, 0
    %v604 = vsel %vm588, 1, 0
    %v605 = vcvt.s32.f32 %v589
    %v606 = vcvt.s32.f32 %v590
    %v607 = vcvt.s32.f32 %v591
    %v608 = vcvt.s32.f32 %v592
    %v609 = vcvt.s32.f32 %v593
    %v610 = vcvt.s32.f32 %v594
    %v611 = vcvt.s32.f32 %v595
    %v612 = vcvt.s32.f32 %v596
    %v613 = vcvt.s32.f32 %v597
    %v614 = vcvt.s32.f32 %v598
    %v615 = vcvt.s32.f32 %v599
    %v616 = vcvt.s32.f32 %v600
    %v617 = vcvt.s32.f32 %v601
    %v618 = vcvt.s32.f32 %v602
    %v619 = vcvt.s32.f32 %v603
    %v620 = vcvt.s32.f32 %v604
    %v621 = vpack.c.bf16 %v606, %v605
    %v622 = vpack.c.bf16 %v608, %v607
    %v623 = vpack.c.bf16 %v610, %v609
    %v624 = vpack.c.bf16 %v612, %v611
    %v625 = vpack.c.bf16 %v614, %v613
    %v626 = vpack.c.bf16 %v616, %v615
    %v627 = vpack.c.bf16 %v618, %v617
    %v628 = vpack.c.bf16 %v620, %v619
    %v629 = vld [vmem:[%s2] sm:$0xf]
    %v630 = vld [vmem:[%s2 + $0x4] sm:$0xf]
    %v631 = vld [vmem:[%s2 + $0x8] sm:$0xf]
    %v632 = vld [vmem:[%s2 + $0xc] sm:$0xf]
    %v633 = vld [vmem:[%s2 + $0x10] sm:$0xf]
    %v634 = vld [vmem:[%s2 + $0x14] sm:$0xf]
    %v635 = vld [vmem:[%s2 + $0x18] sm:$0xf]
    %v636 = vld [vmem:[%s2 + $0x1c] sm:$0xf]
    %v645 = vunpack.c.l.b16 %v629
    %v646 = vunpack.c.l.b16 %v630
    %v647 = vunpack.c.l.b16 %v631
    %v648 = vunpack.c.l.b16 %v632
    %v649 = vunpack.c.l.b16 %v633
    %v650 = vunpack.c.l.b16 %v634
    %v651 = vunpack.c.l.b16 %v635
    %v652 = vunpack.c.l.b16 %v636
    %v653 = vpack.c.b16 %v646, %v645
    %v654 = vpack.c.b16 %v648, %v647
    %v655 = vpack.c.b16 %v650, %v649
    %v656 = vpack.c.b16 %v652, %v651
    %v662 = vsel %vm185, %v621, 0
    %v665 = vsel %vm185, %v622, 0
    %v668 = vsel %vm185, %v623, 0
    %v671 = vsel %vm185, %v624, 0
    %v674 = vsel %vm185, %v625, 0
    %v677 = vsel %vm185, %v626, 0
    %v680 = vsel %vm185, %v627, 0
    %v683 = vsel %vm185, %v628, 0
    %685 = vmatpush.bf16.msra.mxu0 0
    %686 = vmatpush.bf16.msra.mxu0 0
    %687 = vmatpush.bf16.msra.mxu0 0
    %688 = vmatpush.bf16.msra.mxu0 0
    %689 = vmatpush.bf16.msra.mxu0 %v656
    %690 = vmatpush.bf16.msra.mxu0 %v655
    %691 = vmatpush.bf16.msra.mxu0 %v654
    %692 = vmatpush.bf16.msra.mxu0 %v653
    %693 = vmatmul.bf16.gmra.mxu0 %v662
    %v694 = vpop.f32.mrf.mxu0
    %v695 = vadd.f32 0.0, %v694
    %v696 = vpop.f32.mrf.mxu0
    %v697 = vadd.f32 0.0, %v696
    %698 = vmatmul.bf16.gmra.mxu0 %v665
    %v699 = vpop.f32.mrf.mxu0
    %v700 = vadd.f32 0.0, %v699
    %v701 = vpop.f32.mrf.mxu0
    %v702 = vadd.f32 0.0, %v701
    %703 = vmatmul.bf16.gmra.mxu0 %v668
    %v704 = vpop.f32.mrf.mxu0
    %v705 = vadd.f32 0.0, %v704
    %v706 = vpop.f32.mrf.mxu0
    %v707 = vadd.f32 0.0, %v706
    %708 = vmatmul.bf16.gmra.mxu0 %v671
    %v709 = vpop.f32.mrf.mxu0
    %v710 = vadd.f32 0.0, %v709
    %v711 = vpop.f32.mrf.mxu0
    %v712 = vadd.f32 0.0, %v711
    %713 = vmatmul.bf16.gmra.mxu0 %v674
    %v714 = vpop.f32.mrf.mxu0
    %v715 = vadd.f32 0.0, %v714
    %v716 = vpop.f32.mrf.mxu0
    %v717 = vadd.f32 0.0, %v716
    %718 = vmatmul.bf16.gmra.mxu0 %v677
    %v719 = vpop.f32.mrf.mxu0
    %v720 = vadd.f32 0.0, %v719
    %v721 = vpop.f32.mrf.mxu0
    %v722 = vadd.f32 0.0, %v721
    %723 = vmatmul.bf16.gmra.mxu0 %v680
    %v724 = vpop.f32.mrf.mxu0
    %v725 = vadd.f32 0.0, %v724
    %v726 = vpop.f32.mrf.mxu0
    %v727 = vadd.f32 0.0, %v726
    %728 = vmatmul.bf16.gmra.mxu0 %v683
    %v729 = vpop.f32.mrf.mxu0
    %v730 = vadd.f32 0.0, %v729
    %v731 = vpop.f32.mrf.mxu0
    %v732 = vadd.f32 0.0, %v731
    %733 = vdwg.mxu0
    %738 = vmatpush.bf16.msra.mxu0 0
    %739 = vmatpush.bf16.msra.mxu0 0
    %740 = vmatpush.bf16.msra.mxu0 0
    %741 = vmatpush.bf16.msra.mxu0 0
    %742 = vmatpush.bf16.msra.mxu0 %v76
    %743 = vmatpush.bf16.msra.mxu0 %v75
    %744 = vmatpush.bf16.msra.mxu0 %v74
    %745 = vmatpush.bf16.msra.mxu0 %v73
    %746 = vmatmul.bf16.gmra.mxu0 %v662
    %v747 = vpop.f32.mrf.mxu0
    %v748 = vadd.f32 %v695, %v747
    %v749 = vpop.f32.mrf.mxu0
    %v750 = vadd.f32 %v697, %v749
    %751 = vmatmul.bf16.gmra.mxu0 %v665
    %v752 = vpop.f32.mrf.mxu0
    %v753 = vadd.f32 %v700, %v752
    %v754 = vpop.f32.mrf.mxu0
    %v755 = vadd.f32 %v702, %v754
    %756 = vmatmul.bf16.gmra.mxu0 %v668
    %v757 = vpop.f32.mrf.mxu0
    %v758 = vadd.f32 %v705, %v757
    %v759 = vpop.f32.mrf.mxu0
    %v760 = vadd.f32 %v707, %v759
    %761 = vmatmul.bf16.gmra.mxu0 %v671
    %v762 = vpop.f32.mrf.mxu0
    %v763 = vadd.f32 %v710, %v762
    %v764 = vpop.f32.mrf.mxu0
    %v765 = vadd.f32 %v712, %v764
    %766 = vmatmul.bf16.gmra.mxu0 %v674
    %v767 = vpop.f32.mrf.mxu0
    %v768 = vadd.f32 %v715, %v767
    %v769 = vpop.f32.mrf.mxu0
    %v770 = vadd.f32 %v717, %v769
    %771 = vmatmul.bf16.gmra.mxu0 %v677
    %v772 = vpop.f32.mrf.mxu0
    %v773 = vadd.f32 %v720, %v772
    %v774 = vpop.f32.mrf.mxu0
    %v775 = vadd.f32 %v722, %v774
    %776 = vmatmul.bf16.gmra.mxu0 %v680
    %v777 = vpop.f32.mrf.mxu0
    %v778 = vadd.f32 %v725, %v777
    %v779 = vpop.f32.mrf.mxu0
    %v780 = vadd.f32 %v727, %v779
    %781 = vmatmul.bf16.gmra.mxu0 %v683
    %v782 = vpop.f32.mrf.mxu0
    %v783 = vadd.f32 %v730, %v782
    %v784 = vpop.f32.mrf.mxu0
    %v785 = vadd.f32 %v732, %v784
    %786 = vdwg.mxu0
    %787 = vst.msk [vmem:[#allocation2] sm:$0xff] %vm77, %v748
    %788 = vst.msk [vmem:[#allocation2 + $0x8] sm:$0xff] %vm77, %v750
    %789 = vst.msk [vmem:[#allocation2 + $0x10] sm:$0xff] %vm77, %v753
    %790 = vst.msk [vmem:[#allocation2 + $0x18] sm:$0xff] %vm77, %v755
    %791 = vst.msk [vmem:[#allocation2 + $0x20] sm:$0xff] %vm77, %v758
    %792 = vst.msk [vmem:[#allocation2 + $0x28] sm:$0xff] %vm77, %v760
    %793 = vst.msk [vmem:[#allocation2 + $0x30] sm:$0xff] %vm77, %v763
    %794 = vst.msk [vmem:[#allocation2 + $0x38] sm:$0xff] %vm77, %v765
    %795 = vst.msk [vmem:[#allocation2 + $0x40] sm:$0xff] %vm77, %v768
    %796 = vst.msk [vmem:[#allocation2 + $0x48] sm:$0xff] %vm77, %v770
    %797 = vst.msk [vmem:[#allocation2 + $0x50] sm:$0xff] %vm77, %v773
    %798 = vst.msk [vmem:[#allocation2 + $0x58] sm:$0xff] %vm77, %v775
    %799 = vst.msk [vmem:[#allocation2 + $0x60] sm:$0xff] %vm77, %v778
    %800 = vst.msk [vmem:[#allocation2 + $0x68] sm:$0xff] %vm77, %v780
    %801 = vst.msk [vmem:[#allocation2 + $0x70] sm:$0xff] %vm77, %v783
    %802 = vst.msk [vmem:[#allocation2 + $0x78] sm:$0xff] %vm77, %v785
    %v803 = vld [vmem:[%s4] sm:$0xf]
    %v805 = vsel %vm185, %v803, 0
    %807 = vmatpush.bf16.xpose.msra.mxu0 %v683
    %808 = vmatpush.bf16.xpose.msra.mxu0 %v680
    %809 = vmatpush.bf16.xpose.msra.mxu0 %v677
    %810 = vmatpush.bf16.xpose.msra.mxu0 %v674
    %811 = vmatpush.bf16.xpose.msra.mxu0 %v671
    %812 = vmatpush.bf16.xpose.msra.mxu0 %v668
    %813 = vmatpush.bf16.xpose.msra.mxu0 %v665
    %814 = vmatpush.bf16.xpose.msra.mxu0 %v662
    %815 = vmatmul.bf16.gmra.mxu0 %v805
    %v816 = vpop.f32.mrf.mxu0
    %v817 = vadd.f32 0.0, %v816
    %v818 = vpop.f32.mrf.mxu0
    %819 = vdwg.mxu0
    %v820 = vrot.slane %v817, 4
    %v821 = vadd.f32 %v817, %v820
    %v822 = vrot.slane %v821, 2
    %v823 = vadd.f32 %v821, %v822
    %v824 = vrot.slane %v823, 1
    %v825 = vadd.f32 %v823, %v824
    %v826 = vcvt.f32.s32.to.zero.pseudo %v825
    %827 = vst [vmem:[%s6] sm:$0x1] %v826
    %v828 = vunpack.c.l.bf16 %v621
    %v829 = vunpack.c.h.bf16 %v621
    %v830 = vunpack.c.l.bf16 %v622
    %v831 = vunpack.c.h.bf16 %v622
    %v832 = vunpack.c.l.bf16 %v623
    %v833 = vunpack.c.h.bf16 %v623
    %v834 = vunpack.c.l.bf16 %v624
    %v835 = vunpack.c.h.bf16 %v624
    %v836 = vunpack.c.l.bf16 %v625
    %v837 = vunpack.c.h.bf16 %v625
    %v838 = vunpack.c.l.bf16 %v626
    %v839 = vunpack.c.h.bf16 %v626
    %v840 = vunpack.c.l.bf16 %v627
    %v841 = vunpack.c.h.bf16 %v627
    %v842 = vunpack.c.l.bf16 %v628
    %v843 = vunpack.c.h.bf16 %v628
    %v844 = vsel %vm185, %v828, 0.0
    %v845 = vsel %vm185, %v829, 0.0
    %v846 = vadd.f32 %v844, %v845
    %v847 = vsel %vm185, %v830, 0.0
    %v848 = vadd.f32 %v846, %v847
    %v849 = vsel %vm185, %v831, 0.0
    %v850 = vadd.f32 %v848, %v849
    %v851 = vsel %vm185, %v832, 0.0
    %v852 = vadd.f32 %v850, %v851
    %v853 = vsel %vm185, %v833, 0.0
    %v854 = vadd.f32 %v852, %v853
    %v855 = vsel %vm185, %v834, 0.0
    %v856 = vadd.f32 %v854, %v855
    %v857 = vsel %vm185, %v835, 0.0
    %v858 = vadd.f32 %v856, %v857
    %v859 = vsel %vm185, %v836, 0.0
    %v860 = vadd.f32 %v858, %v859
    %v861 = vsel %vm185, %v837, 0.0
    %v862 = vadd.f32 %v860, %v861
    %v863 = vsel %vm185, %v838, 0.0
    %v864 = vadd.f32 %v862, %v863
    %v865 = vsel %vm185, %v839, 0.0
    %v866 = vadd.f32 %v864, %v865
    %v867 = vsel %vm185, %v840, 0.0
    %v868 = vadd.f32 %v866, %v867
    %v869 = vsel %vm185, %v841, 0.0
    %v870 = vadd.f32 %v868, %v869
    %v871 = vsel %vm185, %v842, 0.0
    %v872 = vadd.f32 %v870, %v871
    %v873 = vsel %vm185, %v843, 0.0
    %v874 = vadd.f32 %v872, %v873
    %v875 = vrot.slane %v874, 4
    %v876 = vadd.f32 %v874, %v875
    %v877 = vrot.slane %v876, 2
    %v878 = vadd.f32 %v876, %v877
    %v879 = vrot.slane %v878, 1
    %v880 = vadd.f32 %v878, %v879
    %vm881 = vcmask 516096
    %882 = vst.msk [vmem:[%s7] sm:$0x1] %vm881, %v880
    // Predicated region
    $region22: #{vector_quantize_forward.1} parent=1 // pred_check
      _
    $region23: #{vector_quantize_forward.1} parent=1 // pred_check_branch
      %884 = sbr.rel (0) target = $region25
    $region24: #{vector_quantize_forward.1} parent=1 // pred_region
      %886 = vsyncadd [#allocation3], 1792
      %s887 = sshll.u32 [#allocation2], 4
      %s888 = int_to_ptr.vmem [resolvable:$true] %s887
      %s889 = sshll.u32 %s5, 4
      %s890 = int_to_ptr.hbm [resolvable:$true] %s889
      %895 = dma.vmem_to_hbm [thread:$0]  %s888, 256, %s890, [#allocation3], 128, 128, 8
    $region25: #{vector_quantize_forward.1} parent=1 // pred_fallthru
      _
    // Predicated region
    $region26: #{vector_quantize_forward.1} parent=1 // pred_check
      _
    $region27: #{vector_quantize_forward.1} parent=1 // pred_check_branch
      %897 = sbr.rel (0) target = $region29
    $region28: #{vector_quantize_forward.1} parent=1 // pred_region
      _
    $region29: #{vector_quantize_forward.1} parent=1 // pred_fallthru
      _
    // Predicated region
    $region30: #{vector_quantize_forward.1} parent=1 // pred_check
      _
    $region31: #{vector_quantize_forward.1} parent=1 // pred_check_branch
      %899 = sbr.rel (0) target = $region33
    $region32: #{vector_quantize_forward.1} parent=1 // pred_region
      _
    $region33: #{vector_quantize_forward.1} parent=1 // pred_fallthru
      _
    // Predicated region
    $region34: #{vector_quantize_forward.1} parent=1 // pred_check
      _
    $region35: #{vector_quantize_forward.1} parent=1 // pred_check_branch
      %901 = sbr.rel (0) target = $region37
    $region36: #{vector_quantize_forward.1} parent=1 // pred_region
      %903 = dma.done [#allocation3], 2048
    $region37: #{vector_quantize_forward.1} parent=1 // pred_fallthru
      _
    // Predicated region
    $region38: #{vector_quantize_forward.1} parent=1 // pred_check
      _
    $region39: #{vector_quantize_forward.1} parent=1 // pred_check_branch
      %905 = sbr.rel (0) target = $region41
    $region40: #{vector_quantize_forward.1} parent=1 // pred_region
      _
    $region41: #{vector_quantize_forward.1} parent=1 // pred_fallthru
      _
    // Predicated region
    $region42: #{vector_quantize_forward.1} parent=1 // pred_check
      _
    $region43: #{vector_quantize_forward.1} parent=1 // pred_check_branch
      %907 = sbr.rel (0) target = $region45
    $region44: #{vector_quantize_forward.1} parent=1 // pred_region
      _
    $region45: #{vector_quantize_forward.1} parent=1 // pred_fallthru
      _
    %908 = vsyncpa [#allocation3], 1

</llo_original>
